<compile_context>
chip_gen: v7x
topology: tpu7x:2x2x1
jax: 0.10.0
libtpu: 0.0.40
codegen_flags: <defaults>
</compile_context>

<pallas_src>
import functools

import jax
import jax.numpy as jnp
from jax.experimental import pallas as pl
from jax.experimental.pallas import tpu as pltpu


LEAKY_SLOPE = 0.01  # torch.nn.functional.leaky_relu default negative_slope


def _round_up(x, m):
    return ((x + m - 1) // m) * m


def _cdiv(a, b):
    return (a + b - 1) // b


def _vmem_capacity_bytes():
    try:
        info = pltpu.get_tpu_info()
        for name in ("vmem_capacity_bytes", "vmem_size_bytes", "vmem_bytes"):
            v = getattr(info, name, None)
            if v:
                return int(v)
    except Exception:
        pass
    return 64 << 20  # conservative (v7x per-TC VMEM)


def _mlp_kernel(x_ref, w1_ref, b1_ref, w2_ref, b2_ref, *rest,
                apply_dropout: bool, use_acc: bool, inv_keep: float):
    rest = list(rest)
    mask_ref = rest.pop(0) if apply_dropout else None
    o_ref = rest.pop(0)
    acc_ref = rest.pop(0) if use_acc else None

    # ---- layer1 (this hidden tile): (tb, D_in) @ (D_in, tk_hid), f32 acc on MXU.
    # Weights were pre-cast on the host; only the fresh x tile is cast here.
    x = x_ref[...].astype(w1_ref.dtype)
    h = jnp.dot(x, w1_ref[...], preferred_element_type=jnp.float32)
    h = h + b1_ref[...].astype(jnp.float32)          # (1, tk_hid) broadcasts

    # ---- leaky_relu (VPU, f32): single select.
    h = jnp.maximum(h, LEAKY_SLOPE * h)

    # ---- dropout: bf16 0/1 keep-mask from HBM, exact 1/(1-p) scale in f32.
    if apply_dropout:
        h = h * (mask_ref[...].astype(jnp.float32) * jnp.float32(inv_keep))

    # ---- layer2 partial product over this hidden tile (MXU, f32 acc).
    part = jnp.dot(h.astype(w2_ref.dtype), w2_ref[...],
                   preferred_element_type=jnp.float32)

    if use_acc:
        k = pl.program_id(1)

        @pl.when(k == 0)
        def _():
            acc_ref[...] = jnp.zeros_like(acc_ref)

        acc_ref[...] += part

        @pl.when(k == pl.num_programs(1) - 1)
        def _():
            o_ref[...] = (acc_ref[...] +
                          b2_ref[...].astype(jnp.float32)).astype(o_ref.dtype)
    else:
        o_ref[...] = (part + b2_ref[...].astype(jnp.float32)).astype(o_ref.dtype)


def mlp_forward(x, w1, b1, w2, b2, *, dropout_rate=0.1, training=False,
                rng_key=None, mxu_dtype=jnp.bfloat16, force_hidden_tile=None):
    """Fused MLP forward: layer2(dropout(leaky_relu(layer1(x))))."""
    orig_shape = x.shape
    D_in = orig_shape[-1]
    x2 = x.reshape(-1, D_in)
    B = x2.shape[0]
    D_hid = w1.shape[1]
    D_out = w2.shape[1]
    assert w1.shape == (D_in, D_hid) and w2.shape == (D_hid, D_out)
    assert b1.shape == (D_hid,) and b2.shape == (D_out,)

    apply_dropout = bool(training) and float(dropout_rate) > 0.0
    keep_prob = 1.0 - float(dropout_rate)
    inv_keep = (1.0 / keep_prob) if apply_dropout else 1.0

    # ---------- sizes / budgets ----------
    vmem_cap = _vmem_capacity_bytes()
    budget = int(vmem_cap * 0.80)

    w_dtype = mxu_dtype if mxu_dtype is not None else w1.dtype
    w_isz = jnp.dtype(w_dtype).itemsize
    x_isz = jnp.dtype(x.dtype).itemsize

    D_in_p = _round_up(D_in, 128)
    D_out_p = _round_up(D_out, 128)
    D_hid_128 = _round_up(D_hid, 128)

    # Hidden-dim (K) tiling: keep weights fully resident when they fit ~45% of the
    # budget (v5e/v6e almost always; v7x for moderate sizes), otherwise tile D_hid.
    full_w_bytes = (D_in_p * D_hid_128 + D_hid_128 * D_out_p) * w_isz
    if force_hidden_tile is not None:
        tk_hid = min(_round_up(force_hidden_tile, 128), D_hid_128)
    elif full_w_bytes <= int(budget * 0.45):
        tk_hid = D_hid_128
    else:
        per_col = 2 * (D_in_p + D_out_p) * w_isz        # double-buffered when tiled
        tk_hid = max(128, ((int(budget * 0.45) // per_col) // 128) * 128)
        tk_hid = min(tk_hid, D_hid_128)
    D_hid_p = _round_up(D_hid_128, tk_hid)
    nk = D_hid_p // tk_hid
    use_acc = nk > 1
    buf_w = 1 if nk == 1 else 2                         # Buffered(1) when resident

    # Batch tile from the remaining budget.
    weight_bytes = (buf_w * (D_in_p * tk_hid + tk_hid * D_out_p) * w_isz
                    + buf_w * 8 * tk_hid * 4 + 8 * D_out_p * 4)   # biases sublane-pad
    per_row = (2 * D_in_p * x_isz + 2 * D_out_p * x_isz
               + (2 * tk_hid * 2 if apply_dropout else 0)
               + (D_out_p * 4 if use_acc else 0))
    g = 16 if apply_dropout else 8                      # bf16 mask -> 16-row granule
    B_pg = _round_up(B, g)
    tb = max(g, (budget - weight_bytes) // max(per_row, 1))
    tb = min(tb, 1024, B_pg)
    tb = max(g, (tb // g) * g)
    # Megacore (v7x: 2 TCs): keep >= 2 batch grid steps when the batch permits,
    # so the "parallel" axis can shard and x/out DMA overlaps compute.
    if tb >= B_pg and B_pg >= 2 * g:
        tb = _round_up(_cdiv(B_pg, 2), g)
    nb = _cdiv(B_pg, tb)
    tb = _round_up(_cdiv(B_pg, nb), g)                  # rebalance, minimize padding
    B_pad = nb * tb

    # ---------- host-side padding & pre-casting ----------
    def pad2(a, r, c):
        return jnp.pad(a, ((0, r - a.shape[0]), (0, c - a.shape[1])))

    x_p = pad2(x2, B_pad, D_in_p)
    w1_p = pad2(w1, D_in_p, D_hid_p)
    w2_p = pad2(w2, D_hid_p, D_out_p)
    b1_p = jnp.pad(b1, (0, D_hid_p - D_hid)).reshape(1, D_hid_p).astype(jnp.float32)
    b2_p = jnp.pad(b2, (0, D_out_p - D_out)).reshape(1, D_out_p).astype(jnp.float32)
    if mxu_dtype is not None:                           # pre-cast ONCE on host
        w1_p = w1_p.astype(mxu_dtype)
        w2_p = w2_p.astype(mxu_dtype)

    # ---------- BlockSpecs ----------
    const_w = pl.Buffered(1) if nk == 1 else None       # single-buffer resident blocks
    in_specs = [
        pl.BlockSpec((tb, D_in_p), lambda i, k: (i, 0)),                      # x
        pl.BlockSpec((D_in_p, tk_hid), lambda i, k: (0, k), pipeline_mode=const_w),
        pl.BlockSpec((1, tk_hid), lambda i, k: (0, k), pipeline_mode=const_w),
        pl.BlockSpec((tk_hid, D_out_p), lambda i, k: (k, 0), pipeline_mode=const_w),
        pl.BlockSpec((1, D_out_p), lambda i, k: (0, 0), pipeline_mode=pl.Buffered(1)),
    ]
    args = [x_p, w1_p, b1_p, w2_p, b2_p]

    if apply_dropout:
        if rng_key is None:
            rng_key = jax.random.PRNGKey(0)
        keep = jax.random.bernoulli(rng_key, keep_prob, (B_pad, D_hid_p))
        args.append(keep.astype(jnp.bfloat16))          # 0/1 mask, 2 bytes/elem
        in_specs.append(pl.BlockSpec((tb, tk_hid), lambda i, k: (i, k)))

    scratch_shapes = [pltpu.VMEM((tb, D_out_p), jnp.float32)] if use_acc else []

    kernel = functools.partial(_mlp_kernel, apply_dropout=apply_dropout,
                               use_acc=use_acc, inv_keep=inv_keep)

    # ---------- VMEM limit (generation-aware) ----------
    needed = weight_bytes + per_row * tb
    cp_kwargs = {}
    if needed > (12 << 20):
        cp_kwargs["vmem_limit_bytes"] = int(
            min(int(vmem_cap * 0.85), max(needed + needed // 4, 32 << 20)))

    out_pad = pl.pallas_call(
        kernel,
        out_shape=jax.ShapeDtypeStruct((B_pad, D_out_p), x.dtype),
        grid_spec=pltpu.PrefetchScalarGridSpec(
            num_scalar_prefetch=0,
            grid=(nb, nk),
            in_specs=in_specs,
            out_specs=pl.BlockSpec((tb, D_out_p), lambda i, k: (i, 0)),
            scratch_shapes=scratch_shapes,
        ),
        compiler_params=pltpu.CompilerParams(
            dimension_semantics=("parallel", "arbitrary"), **cp_kwargs),
    )(*args)

    out = out_pad[:B, :D_out]
    return out.reshape(*orig_shape[:-1], D_out)


def mlp_reference(x, w1, b1, w2, b2):
    """Pure-JAX reference (eval mode: dropout is identity)."""
    h = x @ w1 + b1
    h = jnp.where(h > 0, h, LEAKY_SLOPE * h)
    return h @ w2 + b2


if __name__ == "__main__":
    key = jax.random.PRNGKey(0)
    kx, k1, k2, k3, k4, kd, kx2 = jax.random.split(key, 7)

    # ---- Config 1: small, non-lane-aligned dims (exercises host padding to 128).
    B, D_IN, D_HID, D_OUT = 64, 48, 80, 40
    x = jax.random.normal(kx, (B, D_IN), dtype=jnp.float32)
    w1 = jax.random.normal(k1, (D_IN, D_HID), dtype=jnp.float32) / jnp.sqrt(D_IN)
    b1 = jax.random.normal(k2, (D_HID,), dtype=jnp.float32) * 0.01
    w2 = jax.random.normal(k3, (D_HID, D_OUT), dtype=jnp.float32) / jnp.sqrt(D_HID)
    b2 = jax.random.normal(k4, (D_OUT,), dtype=jnp.float32) * 0.01

    ref = mlp_reference(x, w1, b1, w2, b2)

    # Eval, exact f32 MXU path.
    out_f32 = jax.block_until_ready(
        mlp_forward(x, w1, b1, w2, b2, training=False, mxu_dtype=None))
    assert out_f32.shape == (B, D_OUT)
    assert jnp.allclose(out_f32, ref, atol=1e-4, rtol=1e-4), "f32 mismatch vs ref"

    # Eval, default bf16 MXU inputs (f32 accumulation) — loose tolerance.
    out_bf16 = jax.block_until_ready(mlp_forward(x, w1, b1, w2, b2, training=False))
    assert jnp.allclose(out_bf16, ref, atol=1e-1, rtol=1e-1), "bf16 mismatch vs ref"

    # Training-mode dropout (bf16 host mask) — exercise the masked path.
    out_train = jax.block_until_ready(
        mlp_forward(x, w1, b1, w2, b2, dropout_rate=0.1, training=True, rng_key=kd))
    assert out_train.shape == (B, D_OUT)
    assert bool(jnp.all(jnp.isfinite(out_train)))

    # ---- Config 2: hidden-dim (K) tiled accumulator path (grid = (2, 2)).
    B2, D_IN2, D_HID2, D_OUT2 = 32, 128, 256, 128
    ka, kb, kc, ke, kf = jax.random.split(kx2, 5)
    x_2 = jax.random.normal(ka, (B2, D_IN2), dtype=jnp.float32)
    w1_2 = jax.random.normal(kb, (D_IN2, D_HID2), dtype=jnp.float32) / jnp.sqrt(D_IN2)
    b1_2 = jax.random.normal(kc, (D_HID2,), dtype=jnp.float32) * 0.01
    w2_2 = jax.random.normal(ke, (D_HID2, D_OUT2), dtype=jnp.float32) / jnp.sqrt(D_HID2)
    b2_2 = jax.random.normal(kf, (D_OUT2,), dtype=jnp.float32) * 0.01

    ref2 = mlp_reference(x_2, w1_2, b1_2, w2_2, b2_2)
    out_k = jax.block_until_ready(
        mlp_forward(x_2, w1_2, b1_2, w2_2, b2_2, training=False,
                    mxu_dtype=None, force_hidden_tile=128))
    assert jnp.allclose(out_k, ref2, atol=1e-4, rtol=1e-4), "K-tiled mismatch vs ref"

    print("KERNEL_OK")
</pallas_src>

<mosaic_0001>
module attributes {stable_mosaic.version = 11 : i64} {
  func.func @_mlp_kernel(%arg0: i32, %arg1: i32, %arg2: memref<32x128xf32, #tpu.memory_space<vmem>>, %arg3: memref<128x128xf32, #tpu.memory_space<vmem>>, %arg4: memref<1x128xf32, #tpu.memory_space<vmem>>, %arg5: memref<128x128xf32, #tpu.memory_space<vmem>>, %arg6: memref<1x128xf32, #tpu.memory_space<vmem>>, %arg7: memref<32x128xf32, #tpu.memory_space<vmem>>) attributes {dimension_semantics = [#tpu.dimension_semantics<parallel>, #tpu.dimension_semantics<arbitrary>], iteration_bounds = array<i64: 2, 1>, scalar_prefetch = 0 : i64, scratch_operands = 0 : i64, tpu.core_type = #tpu.core_type<tc>, window_params = [{transform_indices = @transform_0, window_bounds = array<i64: 32, 128>}, {pipeline_mode = #tpu.pipeline_mode<synchronous>, transform_indices = @transform_1, window_bounds = array<i64: 128, 128>}, {pipeline_mode = #tpu.pipeline_mode<synchronous>, transform_indices = @transform_2, window_bounds = array<i64: 1, 128>}, {pipeline_mode = #tpu.pipeline_mode<synchronous>, transform_indices = @transform_3, window_bounds = array<i64: 128, 128>}, {pipeline_mode = #tpu.pipeline_mode<synchronous>, transform_indices = @transform_4, window_bounds = array<i64: 1, 128>}, {transform_indices = @transform_5, window_bounds = array<i64: 32, 128>}]} {
    %c0 = arith.constant 0 : index
    %c0_0 = arith.constant 0 : index
    %0 = vector.load %arg2[%c0, %c0_0] : memref<32x128xf32, #tpu.memory_space<vmem>>, vector<32x128xf32>
    %c0_1 = arith.constant 0 : index
    %c0_2 = arith.constant 0 : index
    %1 = vector.load %arg3[%c0_1, %c0_2] : memref<128x128xf32, #tpu.memory_space<vmem>>, vector<128x128xf32>
    %cst = arith.constant dense<0.000000e+00> : vector<32x128xf32>
    %2 = tpu.matmul %0, %1, %cst {dimension_numbers = #tpu.dot_dimension_numbers<[1], [0], [0], [1], [0, 0, 1, 1], [], []>} : vector<32x128xf32>, vector<128x128xf32>, vector<32x128xf32> -> vector<32x128xf32>
    %c0_3 = arith.constant 0 : index
    %c0_4 = arith.constant 0 : index
    %3 = vector.load %arg4[%c0_3, %c0_4] : memref<1x128xf32, #tpu.memory_space<vmem>>, vector<1x128xf32>
    %4 = vector.broadcast %3 : vector<1x128xf32> to vector<32x128xf32>
    %5 = arith.addf %2, %4 : vector<32x128xf32>
    %cst_5 = arith.constant 0.00999999977 : f32
    %6 = vector.broadcast %cst_5 : f32 to vector<32x128xf32>
    %7 = arith.mulf %6, %5 : vector<32x128xf32>
    %8 = arith.maximumf %5, %7 : vector<32x128xf32>
    %c0_6 = arith.constant 0 : index
    %c0_7 = arith.constant 0 : index
    %9 = vector.load %arg5[%c0_6, %c0_7] : memref<128x128xf32, #tpu.memory_space<vmem>>, vector<128x128xf32>
    %cst_8 = arith.constant dense<0.000000e+00> : vector<32x128xf32>
    %10 = tpu.matmul %8, %9, %cst_8 {dimension_numbers = #tpu.dot_dimension_numbers<[1], [0], [0], [1], [0, 0, 1, 1], [], []>} : vector<32x128xf32>, vector<128x128xf32>, vector<32x128xf32> -> vector<32x128xf32>
    %c0_9 = arith.constant 0 : index
    %c0_10 = arith.constant 0 : index
    %11 = vector.load %arg6[%c0_9, %c0_10] : memref<1x128xf32, #tpu.memory_space<vmem>>, vector<1x128xf32>
    %12 = vector.broadcast %11 : vector<1x128xf32> to vector<32x128xf32>
    %13 = arith.addf %10, %12 : vector<32x128xf32>
    %c0_11 = arith.constant 0 : index
    %c0_12 = arith.constant 0 : index
    %14 = vector.load %arg7[%c0_11, %c0_12] : memref<32x128xf32, #tpu.memory_space<vmem>>, vector<32x128xf32>
    tpu.vector_store %arg7[%c0_11, %c0_12], %13 {strides = array<i32>} : memref<32x128xf32, #tpu.memory_space<vmem>>, vector<32x128xf32>,
    return
  }
  func.func @transform_0(%arg0: i32, %arg1: i32) -> (i32, i32) {
    %c0_i32 = arith.constant 0 : i32
    %c0_i32_0 = arith.constant 0 : i32
    return %arg0, %c0_i32 : i32, i32
  }
  func.func @transform_1(%arg0: i32, %arg1: i32) -> (i32, i32) {
    %c0_i32 = arith.constant 0 : i32
    %c0_i32_0 = arith.constant 0 : i32
    return %c0_i32, %arg1 : i32, i32
  }
  func.func @transform_2(%arg0: i32, %arg1: i32) -> (i32, i32) {
    %c0_i32 = arith.constant 0 : i32
    %c0_i32_0 = arith.constant 0 : i32
    return %c0_i32, %arg1 : i32, i32
  }
  func.func @transform_3(%arg0: i32, %arg1: i32) -> (i32, i32) {
    %c0_i32 = arith.constant 0 : i32
    %c0_i32_0 = arith.constant 0 : i32
    return %arg1, %c0_i32 : i32, i32
  }
  func.func @transform_4(%arg0: i32, %arg1: i32) -> (i32, i32) {
    %c0_i32 = arith.constant 0 : i32
    %c0_i32_0 = arith.constant 0 : i32
    %c0_i32_1 = arith.constant 0 : i32
    return %c0_i32, %c0_i32_0 : i32, i32
  }
  func.func @transform_5(%arg0: i32, %arg1: i32) -> (i32, i32) {
    %c0_i32 = arith.constant 0 : i32
    %c0_i32_0 = arith.constant 0 : i32
    return %arg0, %c0_i32 : i32, i32
  }
}

</mosaic_0001>

<llo_original>
// kernel: tpu_custom_call.1
$region0: #{tpu_custom_call.1}
  #allocation0 [shape = 'u32[]', space=smem, size = 0x4, offset = 0x4, fixed_abs, tag = 'smem constant byte address 0x4 - core index']
  #allocation1 [shape = 'u32[144,128]{1,0:T(1,128)}', space=vmem, size = 0x12000, scoped, tag = 'internal scratch']
  %s0 = inlined_call_operand.hbm [shape: f32[64,128], index: 0, kind: input, shape index: {}]
  %s1 = inlined_call_operand.hbm [shape: f32[128,128], index: 1, kind: input, shape index: {}]
  %s2 = inlined_call_operand.vmem [shape: f32[1,128], index: 2, kind: input, shape index: {}]
  %s3 = inlined_call_operand.hbm [shape: f32[128,128], index: 3, kind: input, shape index: {}]
  %s4 = inlined_call_operand.vmem [shape: f32[1,128], index: 4, kind: input, shape index: {}]
  %s5 = inlined_call_operand.hbm [shape: f32[64,128], index: 5, kind: output, shape index: {}]
  %s6 = sld [smem:[#allocation0]]
  $region65: #{tpu_custom_call.1} parent=0
    _
  %s8 = ssub.s32 1, %s6
  %s9 = scalar_select 0, %s8, %s6
  $region1: #{tpu_custom_call.1} parent=0
    #allocation2 [shape = 'u8[32768]{0}', space=vmem, size = 0x8000, scoped, tag = 'input window, operand 0']
    #allocation3 [shape = 's32[2]{0}', space=sflag, size = 0x8, scoped, tag = 'scoped memory for tpu_custom_call.1']
    #allocation4 [shape = 's32[2]{0}', space=sflag, size = 0x8, scoped, tag = 'scoped memory for tpu_custom_call.1']
    #allocation5 [shape = 'u8[65536]{0}', space=vmem, size = 0x10000, scoped, tag = 'input window, operand 1, single buffered']
    #allocation6 [shape = 's32[1]{0}', space=sflag, size = 0x4, scoped, tag = 'scoped memory for tpu_custom_call.1']
    #allocation7 [shape = 'u8[65536]{0}', space=vmem, size = 0x10000, scoped, tag = 'input window, operand 3, single buffered']
    #allocation8 [shape = 'u8[32768]{0}', space=vmem, size = 0x8000, scoped, tag = 'output window, operand 0']
    %10 = vsyncpa [#allocation3], 0
    %s11 = scalar_lea.sflag [#allocation3], 1
    %12 = vsyncpa %s11, 0
    %13 = vsyncpa [#allocation6], 0
    %14 = vsyncpa [#allocation4], 0
    %s15 = scalar_lea.sflag [#allocation4], 1
    %16 = vsyncpa %s15, 0
    loop: start=0, step=1, limit=4
    $region2: #{tpu_custom_call.1} parent=1 // loop_pre_header
      _
    $region3: #{tpu_custom_call.1} parent=1 // loop_header
      %s18 = sphi 0, %s22
      %p19 = scmp.ge.s32.totalorder %s18, 4
      %s25 = sphi 0, %s37
      %s26 = sphi 0, %s33
      %s27 = sphi 0, %s25
      %s28 = sphi 0, %s26
      %s29 = sphi 0, %s27
      %s30 = sphi 0, %s28
      %s40 = sphi 0, %s42
      %s43 = sphi 0, %s40
      %s44 = sphi 0, %s43
      %s60 = sphi 0, %s44
      %s66 = sphi 0, %s68
      %s69 = sphi 0, %s66
      %s70 = sphi 0, %s69
      %s86 = sphi 0, %s70
      %s92 = sphi 0, %s94
      %s95 = sphi 0, %s92
      %s96 = sphi 0, %s95
      %s112 = sphi 0, %s96
      %s118 = sphi 0, %s120
      %s121 = sphi 0, %s118
      %s122 = sphi 0, %s121
      %s138 = sphi 0, %s122
      %s142 = sphi 0, %s142
      %s144 = sphi 0, %s142
      %s145 = sphi 0, %s144
      %s159 = sphi 0, %s145
      %s165 = sphi 0, %s167
      %s168 = sphi 0, %s165
      %s169 = sphi 0, %s168
      %s185 = sphi 0, %s169
    $region4: #{tpu_custom_call.1} parent=1 // loop_header_branch
      %21 = sbr.rel (%p19) target = $region8
    $region5: #{tpu_custom_call.1} parent=1 // loop_body
      %s23 = ssub.s32 %s18, 1
      %s24 = ssub.s32 %s18, 2
      %s31 = sadd.s32 1, %s26
      %p32 = scmp.ge.s32.totalorder %s31, 1
      %s33 = scalar_select %p32, 0, %s31
      %s34 = sadd.s32 1, %s25
      %s35 = scalar_select %p32, %s34, %s25
      %p36 = scmp.ge.s32.totalorder %s35, 2
      %s37 = scalar_select %p36, 0, %s35
      %s38 = ssub.s32 %s25, %s37
      %p39 = scmp.eq.s32.totalorder %s38, 0
      %s41 = sadd.s32 %s40, 1
      %s42 = scalar_select %p39, %s40, %s41
      %p45 = pneg %p39
      %p46 = scmp.eq.s32.totalorder %s18, 1
      %p47 = por %p45, %p46
      %p48 = scmp.ne.s32.totalorder %s40, %s43
      %p49 = scmp.eq.s32.totalorder %s18, 0
      %p50 = por %p48, %p49
      %p51 = scmp.ne.s32.totalorder %s40, %s43
      %p52 = scmp.eq.s32.totalorder %s23, 1
      %p53 = por %p51, %p52
      %p54 = scmp.ne.s32.totalorder %s43, %s44
      %p55 = scmp.eq.s32.totalorder %s23, 0
      %p56 = por %p54, %p55
      %p57 = scmp.ne.s32.totalorder %s43, %s44
      %p58 = scmp.eq.s32.totalorder %s24, 1
      %p59 = por %p57, %p58
      %p61 = scmp.ne.s32.totalorder %s44, %s60
      %p62 = scmp.eq.s32.totalorder %s24, 0
      %p63 = por %p61, %p62
      %s64 = ssub.s32 %s26, %s33
      %p65 = scmp.eq.s32.totalorder %s64, 0
      %s67 = sadd.s32 %s66, 1
      %s68 = scalar_select %p65, %s66, %s67
      %p71 = pneg %p65
      %p72 = scmp.eq.s32.totalorder %s18, 1
      %p73 = por %p71, %p72
      %p74 = scmp.ne.s32.totalorder %s66, %s69
      %p75 = scmp.eq.s32.totalorder %s18, 0
      %p76 = por %p74, %p75
      %p77 = scmp.ne.s32.totalorder %s66, %s69
      %p78 = scmp.eq.s32.totalorder %s23, 1
      %p79 = por %p77, %p78
      %p80 = scmp.ne.s32.totalorder %s69, %s70
      %p81 = scmp.eq.s32.totalorder %s23, 0
      %p82 = por %p80, %p81
      %p83 = scmp.ne.s32.totalorder %s69, %s70
      %p84 = scmp.eq.s32.totalorder %s24, 1
      %p85 = por %p83, %p84
      %p87 = scmp.ne.s32.totalorder %s70, %s86
      %p88 = scmp.eq.s32.totalorder %s24, 0
      %p89 = por %p87, %p88
      %s90 = ssub.s32 %s26, %s33
      %p91 = scmp.eq.s32.totalorder %s90, 0
      %s93 = sadd.s32 %s92, 1
      %s94 = scalar_select %p91, %s92, %s93
      %p97 = pneg %p91
      %p98 = scmp.eq.s32.totalorder %s18, 1
      %p99 = por %p97, %p98
      %p100 = scmp.ne.s32.totalorder %s92, %s95
      %p101 = scmp.eq.s32.totalorder %s18, 0
      %p102 = por %p100, %p101
      %p103 = scmp.ne.s32.totalorder %s92, %s95
      %p104 = scmp.eq.s32.totalorder %s23, 1
      %p105 = por %p103, %p104
      %p106 = scmp.ne.s32.totalorder %s95, %s96
      %p107 = scmp.eq.s32.totalorder %s23, 0
      %p108 = por %p106, %p107
      %p109 = scmp.ne.s32.totalorder %s95, %s96
      %p110 = scmp.eq.s32.totalorder %s24, 1
      %p111 = por %p109, %p110
      %p113 = scmp.ne.s32.totalorder %s96, %s112
      %p114 = scmp.eq.s32.totalorder %s24, 0
      %p115 = por %p113, %p114
      %s116 = ssub.s32 %s26, %s33
      %p117 = scmp.eq.s32.totalorder %s116, 0
      %s119 = sadd.s32 %s118, 1
      %s120 = scalar_select %p117, %s118, %s119
      %p123 = pneg %p117
      %p124 = scmp.eq.s32.totalorder %s18, 1
      %p125 = por %p123, %p124
      %p126 = scmp.ne.s32.totalorder %s118, %s121
      %p127 = scmp.eq.s32.totalorder %s18, 0
      %p128 = por %p126, %p127
      %p129 = scmp.ne.s32.totalorder %s118, %s121
      %p130 = scmp.eq.s32.totalorder %s23, 1
      %p131 = por %p129, %p130
      %p132 = scmp.ne.s32.totalorder %s121, %s122
      %p133 = scmp.eq.s32.totalorder %s23, 0
      %p134 = por %p132, %p133
      %p135 = scmp.ne.s32.totalorder %s121, %s122
      %p136 = scmp.eq.s32.totalorder %s24, 1
      %p137 = por %p135, %p136
      %p139 = scmp.ne.s32.totalorder %s122, %s138
      %p140 = scmp.eq.s32.totalorder %s24, 0
      %p141 = por %p139, %p140
      %s143 = sadd.s32 %s142, 1
      %p146 = scmp.eq.s32.totalorder %s18, 1
      %p147 = scmp.ne.s32.totalorder %s142, %s144
      %p148 = scmp.eq.s32.totalorder %s18, 0
      %p149 = por %p147, %p148
      %p150 = scmp.ne.s32.totalorder %s142, %s144
      %p151 = scmp.eq.s32.totalorder %s23, 1
      %p152 = por %p150, %p151
      %p153 = scmp.ne.s32.totalorder %s144, %s145
      %p154 = scmp.eq.s32.totalorder %s23, 0
      %p155 = por %p153, %p154
      %p156 = scmp.ne.s32.totalorder %s144, %s145
      %p157 = scmp.eq.s32.totalorder %s24, 1
      %p158 = por %p156, %p157
      %p160 = scmp.ne.s32.totalorder %s145, %s159
      %p161 = scmp.eq.s32.totalorder %s24, 0
      %p162 = por %p160, %p161
      %s163 = ssub.s32 %s25, %s37
      %p164 = scmp.eq.s32.totalorder %s163, 0
      %s166 = sadd.s32 %s165, 1
      %s167 = scalar_select %p164, %s165, %s166
      %p170 = pneg %p164
      %p171 = scmp.eq.s32.totalorder %s18, 1
      %p172 = por %p170, %p171
      %p173 = scmp.ne.s32.totalorder %s165, %s168
      %p174 = scmp.eq.s32.totalorder %s18, 0
      %p175 = por %p173, %p174
      %p176 = scmp.ne.s32.totalorder %s165, %s168
      %p177 = scmp.eq.s32.totalorder %s23, 1
      %p178 = por %p176, %p177
      %p179 = scmp.ne.s32.totalorder %s168, %s169
      %p180 = scmp.eq.s32.totalorder %s23, 0
      %p181 = por %p179, %p180
      %p182 = scmp.ne.s32.totalorder %s168, %s169
      %p183 = scmp.eq.s32.totalorder %s24, 1
      %p184 = por %p182, %p183
      %p186 = scmp.ne.s32.totalorder %s169, %s185
      %p187 = scmp.eq.s32.totalorder %s24, 0
      %p188 = por %p186, %p187
      %p189 = scmp.le.s32.totalorder 1, %s18
      %p190 = scmp.lt.s32.totalorder %s18, 3
      %p191 = pnand %p189, %p190
      %p192 = pneg %p191
      // Predicated region
      $region9: #{tpu_custom_call.1} parent=5 // pred_check
        _
      $region10: #{tpu_custom_call.1} parent=5 // pred_check_branch
        %194 = sbr.rel (%p191) target = $region12
      $region11: #{tpu_custom_call.1} parent=5 // pred_region
        %s195 = ssub.s32 %s18, 1
        // Predicated region
        $region13: #{tpu_custom_call.1} parent=11 // pred_check
          %p196 = pneg %p82
        $region14: #{tpu_custom_call.1} parent=11 // pred_check_branch
          %198 = sbr.rel (%p196) target = $region16
        $region15: #{tpu_custom_call.1} parent=11 // pred_region
          %s200 = ssub.s32 2048, 2048
          %201 = vsyncadd [#allocation6], %s200
          %s202 = smul.addr %s28, 128
          %s203 = scalar_lea.hbm %s1, %s202
          %s204 = sshll.u32 [#allocation5], 4
          %s205 = int_to_ptr.vmem [resolvable:$true] %s204
          %210 = dma.hbm_to_vmem [thread:$0]  %s203, 2048, %s205, [#allocation6], 128, 128, 8
        $region16: #{tpu_custom_call.1} parent=11 // pred_fallthru
          _
        // Predicated region
        $region17: #{tpu_custom_call.1} parent=11 // pred_check
          %p211 = pneg %p108
        $region18: #{tpu_custom_call.1} parent=11 // pred_check_branch
          %213 = sbr.rel (%p211) target = $region20
        $region19: #{tpu_custom_call.1} parent=11 // pred_region
          %p214 = scmp.lt.s32.totalorder %s28, 0
          %s215 = scalar_select %p214, %s28, 0
          %s216 = scalar_lea.vmem %s2, %s215
        $region20: #{tpu_custom_call.1} parent=11 // pred_fallthru
          _
        // Predicated region
        $region21: #{tpu_custom_call.1} parent=11 // pred_check
          %p217 = pneg %p134
        $region22: #{tpu_custom_call.1} parent=11 // pred_check_branch
          %219 = sbr.rel (%p217) target = $region24
        $region23: #{tpu_custom_call.1} parent=11 // pred_region
          %s220 = smul.u32 16, %s28
          %s222 = ssub.s32 2048, 2048
          %223 = vsyncadd [#allocation6], %s222
          %s224 = smul.addr %s220, 128
          %s225 = scalar_lea.hbm %s3, %s224
          %s226 = sshll.u32 [#allocation7], 4
          %s227 = int_to_ptr.vmem [resolvable:$true] %s226
          %232 = dma.hbm_to_vmem [thread:$0]  %s225, 2048, %s227, [#allocation6], 128, 128, 8
        $region24: #{tpu_custom_call.1} parent=11 // pred_fallthru
          _
        // Predicated region
        $region25: #{tpu_custom_call.1} parent=11 // pred_check
          %p233 = pneg %p155
        $region26: #{tpu_custom_call.1} parent=11 // pred_check_branch
          %235 = sbr.rel (%p233) target = $region28
        $region27: #{tpu_custom_call.1} parent=11 // pred_region
          _
        $region28: #{tpu_custom_call.1} parent=11 // pred_fallthru
          _
      $region12: #{tpu_custom_call.1} parent=5 // pred_fallthru
        _
      %p236 = scmp.lt.s32.totalorder %s18, 2
      // Predicated region
      $region29: #{tpu_custom_call.1} parent=5 // pred_check
        %p237 = pneg %p236
      $region30: #{tpu_custom_call.1} parent=5 // pred_check_branch
        %239 = sbr.rel (%p237) target = $region32
      $region31: #{tpu_custom_call.1} parent=5 // pred_region
        // Predicated region
        $region33: #{tpu_custom_call.1} parent=31 // pred_check
          %p240 = pneg %p50
        $region34: #{tpu_custom_call.1} parent=31 // pred_check_branch
          %242 = sbr.rel (%p240) target = $region36
        $region35: #{tpu_custom_call.1} parent=31 // pred_region
          %s243 = sand.u32 %s40, 1
          %s244 = scalar_lea.sflag [#allocation3], %s243
          %s245 = sand.u32 %s40, 1
          %s246 = smul.addr %s245, 32
          %s247 = scalar_lea.vmem [#allocation2], %s246
          %s248 = smul.u32 4, %s25
          %s250 = ssub.s32 512, 512
          %251 = vsyncadd %s244, %s250
          %s252 = smul.addr %s248, 128
          %s253 = scalar_lea.hbm %s0, %s252
          %s254 = sshll.u32 %s247, 4
          %s255 = int_to_ptr.vmem [resolvable:$true] %s254
          %260 = dma.hbm_to_vmem [thread:$0]  %s253, 512, %s255, %s244, 128, 128, 8
        $region36: #{tpu_custom_call.1} parent=31 // pred_fallthru
          _
      $region32: #{tpu_custom_call.1} parent=5 // pred_fallthru
        _
      %p261 = scmp.le.s32.totalorder 1, %s18
      %p262 = scmp.lt.s32.totalorder %s18, 3
      %p263 = pnand %p261, %p262
      %p264 = pneg %p263
      // Predicated region
      $region37: #{tpu_custom_call.1} parent=5 // pred_check
        _
      $region38: #{tpu_custom_call.1} parent=5 // pred_check_branch
        %266 = sbr.rel (%p263) target = $region40
      $region39: #{tpu_custom_call.1} parent=5 // pred_region
        %s267 = ssub.s32 %s18, 1
        %s268 = sand.u32 %s43, 1
        %s269 = scalar_lea.sflag [#allocation3], %s268
        %s270 = sand.u32 %s43, 1
        %s271 = smul.addr %s270, 32
        %s272 = scalar_lea.vmem [#allocation2], %s271
        // Predicated region
        $region41: #{tpu_custom_call.1} parent=39 // pred_check
          %p273 = pneg %p56
        $region42: #{tpu_custom_call.1} parent=39 // pred_check_branch
          %275 = sbr.rel (%p273) target = $region44
        $region43: #{tpu_custom_call.1} parent=39 // pred_region
          %276 = dma.done %s269, 512
        $region44: #{tpu_custom_call.1} parent=39 // pred_fallthru
          _
        // Predicated region
        $region45: #{tpu_custom_call.1} parent=39 // pred_check
          %p277 = pneg %p82
        $region46: #{tpu_custom_call.1} parent=39 // pred_check_branch
          %279 = sbr.rel (%p277) target = $region48
        $region47: #{tpu_custom_call.1} parent=39 // pred_region
          %280 = dma.done [#allocation6], 2048
        $region48: #{tpu_custom_call.1} parent=39 // pred_fallthru
          _
        // Predicated region
        $region49: #{tpu_custom_call.1} parent=39 // pred_check
          %p281 = pneg %p134
        $region50: #{tpu_custom_call.1} parent=39 // pred_check_branch
          %283 = sbr.rel (%p281) target = $region52
        $region51: #{tpu_custom_call.1} parent=39 // pred_region
          %284 = dma.done [#allocation6], 2048
        $region52: #{tpu_custom_call.1} parent=39 // pred_fallthru
          _
        %s285 = sand.u32 %s43, 1
        %s286 = scalar_lea.sflag [#allocation3], %s285
        %s287 = sand.u32 %s43, 1
        %s288 = smul.addr %s287, 32
        %s289 = scalar_lea.vmem [#allocation2], %s288
        %p290 = pneg %p56
        %p291 = pneg %p53
        %p292 = pneg %p82
        %p293 = pneg %p79
        %p294 = scmp.lt.s32.totalorder %s28, 0
        %s295 = scalar_select %p294, %s28, 0
        %s296 = scalar_lea.vmem %s2, %s295
        %p297 = pneg %p108
        %p298 = pneg %p105
        %p299 = pneg %p134
        %p300 = pneg %p131
        %p301 = pneg %p155
        %p302 = pneg %p152
        %p303 = pneg %p181
        %p304 = pneg %p178
        %s305 = sand.u32 %s168, 1
        %s306 = scalar_lea.sflag [#allocation4], %s305
        %s307 = sand.u32 %s168, 1
        %s308 = smul.addr %s307, 32
        %s309 = scalar_lea.vmem [#allocation8], %s308
        %s310 = smul.u32 4, %s27
        %p311 = scmp.lt.s32.totalorder %s28, 0
        %s312 = scalar_select %p311, %s28, 0
        %s313 = scalar_lea.vmem %s2, %s312
        %s314 = smul.u32 16, %s28
        %s315 = smul.u32 4, %s27
        %v316 = vld [vmem:[%s272] sm:$0xff]
        %v317 = vld [vmem:[%s272 + $0x8] sm:$0xff]
        %v318 = vld [vmem:[%s272 + $0x10] sm:$0xff]
        %v319 = vld [vmem:[%s272 + $0x18] sm:$0xff]
        %v320 = vld [vmem:[#allocation5] sm:$0xff]
        %v321 = vld [vmem:[#allocation5 + $0x8] sm:$0xff]
        %v322 = vld [vmem:[#allocation5 + $0x10] sm:$0xff]
        %v323 = vld [vmem:[#allocation5 + $0x18] sm:$0xff]
        %v324 = vld [vmem:[#allocation5 + $0x20] sm:$0xff]
        %v325 = vld [vmem:[#allocation5 + $0x28] sm:$0xff]
        %v326 = vld [vmem:[#allocation5 + $0x30] sm:$0xff]
        %v327 = vld [vmem:[#allocation5 + $0x38] sm:$0xff]
        %v328 = vld [vmem:[#allocation5 + $0x40] sm:$0xff]
        %v329 = vld [vmem:[#allocation5 + $0x48] sm:$0xff]
        %v330 = vld [vmem:[#allocation5 + $0x50] sm:$0xff]
        %v331 = vld [vmem:[#allocation5 + $0x58] sm:$0xff]
        %v332 = vld [vmem:[#allocation5 + $0x60] sm:$0xff]
        %v333 = vld [vmem:[#allocation5 + $0x68] sm:$0xff]
        %v334 = vld [vmem:[#allocation5 + $0x70] sm:$0xff]
        %v335 = vld [vmem:[#allocation5 + $0x78] sm:$0xff]
        %v336 = vld [vmem:[%s313] sm:$0x1]
        %v338 = vlaneseq
        %v339 = vshrl.u32 %v338, 7
        %v340 = vsub.s32 0, %v339
        %v341 = vrot.slane %v336, %v340
        %343 = vmatprep.subr.mxu0 0.0
        %344 = vmatpush1.msra.mxu0 %v320
        %345 = vmatprep.subr.mxu0 0.0
        %346 = vmatpush1.msra.mxu0 %v321
        %347 = vmatprep.subr.mxu0 0.0
        %348 = vmatpush1.msra.mxu0 %v322
        %349 = vmatprep.subr.mxu0 0.0
        %350 = vmatpush1.msra.mxu0 %v323
        %351 = vmatprep.subr.mxu0 0.0
        %352 = vmatpush1.msra.mxu0 %v324
        %353 = vmatprep.subr.mxu0 0.0
        %354 = vmatpush1.msra.mxu0 %v325
        %355 = vmatprep.subr.mxu0 0.0
        %356 = vmatpush1.msra.mxu0 %v326
        %357 = vmatprep.subr.mxu0 0.0
        %358 = vmatpush1.msra.mxu0 %v327
        %359 = vmatprep.subr.mxu0 0.0
        %360 = vmatpush1.msra.mxu0 %v328
        %361 = vmatprep.subr.mxu0 0.0
        %362 = vmatpush1.msra.mxu0 %v329
        %363 = vmatprep.subr.mxu0 0.0
        %364 = vmatpush1.msra.mxu0 %v330
        %365 = vmatprep.subr.mxu0 0.0
        %366 = vmatpush1.msra.mxu0 %v331
        %367 = vmatprep.subr.mxu0 0.0
        %368 = vmatpush1.msra.mxu0 %v332
        %369 = vmatprep.subr.mxu0 0.0
        %370 = vmatpush1.msra.mxu0 %v333
        %371 = vmatprep.subr.mxu0 0.0
        %372 = vmatpush1.msra.mxu0 %v334
        %373 = vmatprep.subr.mxu0 0.0
        %374 = vmatpush1.msra.mxu0 %v335
        %375 = vmatprep.subr.mxu0 0.0
        %376 = vmatpush1.msra.mxu0 0.0
        %377 = vmatprep.subr.mxu0 0.0
        %378 = vmatpush1.msra.mxu0 0.0
        %379 = vmatprep.subr.mxu0 0.0
        %380 = vmatpush1.msra.mxu0 0.0
        %381 = vmatprep.subr.mxu0 0.0
        %382 = vmatpush1.msra.mxu0 0.0
        %383 = vmatprep.subr.mxu0 0.0
        %384 = vmatpush1.msra.mxu0 0.0
        %385 = vmatprep.subr.mxu0 0.0
        %386 = vmatpush1.msra.mxu0 0.0
        %387 = vmatprep.subr.mxu0 0.0
        %388 = vmatpush1.msra.mxu0 0.0
        %389 = vmatprep.subr.mxu0 0.0
        %390 = vmatpush1.msra.mxu0 0.0
        %391 = vmatprep.subr.mxu0 0.0
        %392 = vmatpush1.msra.mxu0 0.0
        %393 = vmatprep.subr.mxu0 0.0
        %394 = vmatpush1.msra.mxu0 0.0
        %395 = vmatprep.subr.mxu0 0.0
        %396 = vmatpush1.msra.mxu0 0.0
        %397 = vmatprep.subr.mxu0 0.0
        %398 = vmatpush1.msra.mxu0 0.0
        %399 = vmatprep.subr.mxu0 0.0
        %400 = vmatpush1.msra.mxu0 0.0
        %401 = vmatprep.subr.mxu0 0.0
        %402 = vmatpush1.msra.mxu0 0.0
        %403 = vmatprep.subr.mxu0 0.0
        %404 = vmatpush1.msra.mxu0 0.0
        %405 = vmatprep.subr.mxu0 0.0
        %406 = vmatpush1.msra.mxu0 0.0
        %407 = vmatprep.mubr.f32.mxu0 0.0
        %408 = vmatmul.mubr.f32.gmra.mrb[0].mxu0 %v316
        %v409 = vpop.f32.mrb[0].mxu0
        %v410 = vadd.f32 %v341, %v409
        %v411 = vpop.f32.mrb[0].mxu0
        %412 = vmatprep.mubr.f32.mxu0 0.0
        %413 = vmatmul.mubr.f32.gmra.mrb[0].mxu0 %v317
        %v414 = vpop.f32.mrb[0].mxu0
        %v415 = vadd.f32 %v341, %v414
        %v416 = vpop.f32.mrb[0].mxu0
        %417 = vmatprep.mubr.f32.mxu0 0.0
        %418 = vmatmul.mubr.f32.gmra.mrb[0].mxu0 %v318
        %v419 = vpop.f32.mrb[0].mxu0
        %v420 = vadd.f32 %v341, %v419
        %v421 = vpop.f32.mrb[0].mxu0
        %422 = vmatprep.mubr.f32.mxu0 0.0
        %423 = vmatmul.mubr.f32.gmra.mrb[0].mxu0 %v319
        %v424 = vpop.f32.mrb[0].mxu0
        %v425 = vadd.f32 %v341, %v424
        %v426 = vpop.f32.mrb[0].mxu0
        %427 = vdwg.mxu0
        %v428 = vmul.f32 %v410, 0.01
        %v429 = vmul.f32 %v415, 0.01
        %v430 = vmul.f32 %v420, 0.01
        %v431 = vmul.f32 %v425, 0.01
        %v432 = vmax.f32 %v410, %v428
        %v433 = vmax.f32 %v415, %v429
        %v434 = vmax.f32 %v420, %v430
        %v435 = vmax.f32 %v425, %v431
        %v436 = vld [vmem:[#allocation7] sm:$0xff]
        %v437 = vld [vmem:[#allocation7 + $0x8] sm:$0xff]
        %v438 = vld [vmem:[#allocation7 + $0x10] sm:$0xff]
        %v439 = vld [vmem:[#allocation7 + $0x18] sm:$0xff]
        %v440 = vld [vmem:[#allocation7 + $0x20] sm:$0xff]
        %v441 = vld [vmem:[#allocation7 + $0x28] sm:$0xff]
        %v442 = vld [vmem:[#allocation7 + $0x30] sm:$0xff]
        %v443 = vld [vmem:[#allocation7 + $0x38] sm:$0xff]
        %v444 = vld [vmem:[#allocation7 + $0x40] sm:$0xff]
        %v445 = vld [vmem:[#allocation7 + $0x48] sm:$0xff]
        %v446 = vld [vmem:[#allocation7 + $0x50] sm:$0xff]
        %v447 = vld [vmem:[#allocation7 + $0x58] sm:$0xff]
        %v448 = vld [vmem:[#allocation7 + $0x60] sm:$0xff]
        %v449 = vld [vmem:[#allocation7 + $0x68] sm:$0xff]
        %v450 = vld [vmem:[#allocation7 + $0x70] sm:$0xff]
        %v451 = vld [vmem:[#allocation7 + $0x78] sm:$0xff]
        %v452 = vld [vmem:[%s4] sm:$0x1]
        %v454 = vlaneseq
        %v455 = vshrl.u32 %v454, 7
        %v456 = vsub.s32 0, %v455
        %v457 = vrot.slane %v452, %v456
        %459 = vmatprep.subr.mxu0 0.0
        %460 = vmatpush1.msra.mxu0 %v436
        %461 = vmatprep.subr.mxu0 0.0
        %462 = vmatpush1.msra.mxu0 %v437
        %463 = vmatprep.subr.mxu0 0.0
        %464 = vmatpush1.msra.mxu0 %v438
        %465 = vmatprep.subr.mxu0 0.0
        %466 = vmatpush1.msra.mxu0 %v439
        %467 = vmatprep.subr.mxu0 0.0
        %468 = vmatpush1.msra.mxu0 %v440
        %469 = vmatprep.subr.mxu0 0.0
        %470 = vmatpush1.msra.mxu0 %v441
        %471 = vmatprep.subr.mxu0 0.0
        %472 = vmatpush1.msra.mxu0 %v442
        %473 = vmatprep.subr.mxu0 0.0
        %474 = vmatpush1.msra.mxu0 %v443
        %475 = vmatprep.subr.mxu0 0.0
        %476 = vmatpush1.msra.mxu0 %v444
        %477 = vmatprep.subr.mxu0 0.0
        %478 = vmatpush1.msra.mxu0 %v445
        %479 = vmatprep.subr.mxu0 0.0
        %480 = vmatpush1.msra.mxu0 %v446
        %481 = vmatprep.subr.mxu0 0.0
        %482 = vmatpush1.msra.mxu0 %v447
        %483 = vmatprep.subr.mxu0 0.0
        %484 = vmatpush1.msra.mxu0 %v448
        %485 = vmatprep.subr.mxu0 0.0
        %486 = vmatpush1.msra.mxu0 %v449
        %487 = vmatprep.subr.mxu0 0.0
        %488 = vmatpush1.msra.mxu0 %v450
        %489 = vmatprep.subr.mxu0 0.0
        %490 = vmatpush1.msra.mxu0 %v451
        %491 = vmatprep.subr.mxu0 0.0
        %492 = vmatpush1.msra.mxu0 0.0
        %493 = vmatprep.subr.mxu0 0.0
        %494 = vmatpush1.msra.mxu0 0.0
        %495 = vmatprep.subr.mxu0 0.0
        %496 = vmatpush1.msra.mxu0 0.0
        %497 = vmatprep.subr.mxu0 0.0
        %498 = vmatpush1.msra.mxu0 0.0
        %499 = vmatprep.subr.mxu0 0.0
        %500 = vmatpush1.msra.mxu0 0.0
        %501 = vmatprep.subr.mxu0 0.0
        %502 = vmatpush1.msra.mxu0 0.0
        %503 = vmatprep.subr.mxu0 0.0
        %504 = vmatpush1.msra.mxu0 0.0
        %505 = vmatprep.subr.mxu0 0.0
        %506 = vmatpush1.msra.mxu0 0.0
        %507 = vmatprep.subr.mxu0 0.0
        %508 = vmatpush1.msra.mxu0 0.0
        %509 = vmatprep.subr.mxu0 0.0
        %510 = vmatpush1.msra.mxu0 0.0
        %511 = vmatprep.subr.mxu0 0.0
        %512 = vmatpush1.msra.mxu0 0.0
        %513 = vmatprep.subr.mxu0 0.0
        %514 = vmatpush1.msra.mxu0 0.0
        %515 = vmatprep.subr.mxu0 0.0
        %516 = vmatpush1.msra.mxu0 0.0
        %517 = vmatprep.subr.mxu0 0.0
        %518 = vmatpush1.msra.mxu0 0.0
        %519 = vmatprep.subr.mxu0 0.0
        %520 = vmatpush1.msra.mxu0 0.0
        %521 = vmatprep.subr.mxu0 0.0
        %522 = vmatpush1.msra.mxu0 0.0
        %523 = vmatprep.mubr.f32.mxu0 0.0
        %524 = vmatmul.mubr.f32.gmra.mrb[0].mxu0 %v432
        %v525 = vpop.f32.mrb[0].mxu0
        %v526 = vadd.f32 %v457, %v525
        %v527 = vpop.f32.mrb[0].mxu0
        %528 = vmatprep.mubr.f32.mxu0 0.0
        %529 = vmatmul.mubr.f32.gmra.mrb[0].mxu0 %v433
        %v530 = vpop.f32.mrb[0].mxu0
        %v531 = vadd.f32 %v457, %v530
        %v532 = vpop.f32.mrb[0].mxu0
        %533 = vmatprep.mubr.f32.mxu0 0.0
        %534 = vmatmul.mubr.f32.gmra.mrb[0].mxu0 %v434
        %v535 = vpop.f32.mrb[0].mxu0
        %v536 = vadd.f32 %v457, %v535
        %v537 = vpop.f32.mrb[0].mxu0
        %538 = vmatprep.mubr.f32.mxu0 0.0
        %539 = vmatmul.mubr.f32.gmra.mrb[0].mxu0 %v435
        %v540 = vpop.f32.mrb[0].mxu0
        %v541 = vadd.f32 %v457, %v540
        %v542 = vpop.f32.mrb[0].mxu0
        %543 = vdwg.mxu0
        %544 = vst [vmem:[%s309] sm:$0xff] %v526
        %545 = vst [vmem:[%s309 + $0x8] sm:$0xff] %v531
        %546 = vst [vmem:[%s309 + $0x10] sm:$0xff] %v536
        %547 = vst [vmem:[%s309 + $0x18] sm:$0xff] %v541
        %s548 = sand.u32 %s168, 1
        %s549 = scalar_lea.sflag [#allocation4], %s548
        %s550 = sand.u32 %s168, 1
        %s551 = smul.addr %s550, 32
        %s552 = scalar_lea.vmem [#allocation8], %s551
        // Predicated region
        $region53: #{tpu_custom_call.1} parent=39 // pred_check
          %p553 = pneg %p178
        $region54: #{tpu_custom_call.1} parent=39 // pred_check_branch
          %555 = sbr.rel (%p553) target = $region56
        $region55: #{tpu_custom_call.1} parent=39 // pred_region
          %s556 = smul.u32 4, %s27
          %s558 = ssub.s32 512, 512
          %559 = vsyncadd %s549, %s558
          %s560 = smul.addr %s556, 128
          %s561 = scalar_lea.hbm %s5, %s560
          %s562 = sshll.u32 %s552, 4
          %s563 = int_to_ptr.vmem [resolvable:$true] %s562
          %568 = dma.vmem_to_hbm [thread:$0]  %s563, 512, %s561, %s549, 128, 128, 8
        $region56: #{tpu_custom_call.1} parent=39 // pred_fallthru
          _
      $region40: #{tpu_custom_call.1} parent=5 // pred_fallthru
        _
      %p569 = scmp.le.s32.totalorder 2, %s18
      // Predicated region
      $region57: #{tpu_custom_call.1} parent=5 // pred_check
        %p570 = pneg %p569
      $region58: #{tpu_custom_call.1} parent=5 // pred_check_branch
        %572 = sbr.rel (%p570) target = $region60
      $region59: #{tpu_custom_call.1} parent=5 // pred_region
        %s573 = ssub.s32 %s18, 2
        // Predicated region
        $region61: #{tpu_custom_call.1} parent=59 // pred_check
          %p574 = pneg %p184
        $region62: #{tpu_custom_call.1} parent=59 // pred_check_branch
          %576 = sbr.rel (%p574) target = $region64
        $region63: #{tpu_custom_call.1} parent=59 // pred_region
          %s577 = sand.u32 %s169, 1
          %s578 = scalar_lea.sflag [#allocation4], %s577
          %s579 = sand.u32 %s169, 1
          %s580 = smul.addr %s579, 32
          %s581 = scalar_lea.vmem [#allocation8], %s580
          %582 = dma.done %s578, 512
        $region64: #{tpu_custom_call.1} parent=59 // pred_fallthru
          _
      $region60: #{tpu_custom_call.1} parent=5 // pred_fallthru
        _
    $region6: #{tpu_custom_call.1} parent=1 // loop_footer
      %s22 = sadd.s32 1, %s18
    $region7: #{tpu_custom_call.1} parent=1 // loop_footer_branch
      %17 = sbr.rel target = $region3
    $region8: #{tpu_custom_call.1} parent=1 // loop_exit
      _
    %583 = vsyncpa [#allocation3], 1
    %s584 = scalar_lea.sflag [#allocation3], 1
    %585 = vsyncpa %s584, 1
    %586 = vsyncpa [#allocation6], 1
    %587 = vsyncpa [#allocation4], 1
    %s588 = scalar_lea.sflag [#allocation4], 1
    %589 = vsyncpa %s588, 1

</llo_original>
